<compile_context>
chip_gen: v7x
topology: tpu7x:2x2x1
jax: 0.10.0
libtpu: 0.0.40
codegen_flags: <defaults>
</compile_context>

<pallas_src>
import math

import jax
import jax.numpy as jnp
from jax.experimental import pallas as pl
from jax.experimental.pallas import tpu as pltpu


NEG_SLOPE = 0.05  # nn.LeakyReLU(negative_slope=0.05)


def _seasonality_kernel(x_ref,
                        w1_ref, b1_ref,
                        w2_ref, b2_ref,
                        w3_ref, b3_ref,
                        w4_ref, b4_ref,
                        wout_ref,
                        out_ref):
    """4x (Linear + LeakyReLU) -> fused (theta-projection x basis) matmul."""

    def lrelu(v):
        return jnp.where(v > 0, v, NEG_SLOPE * v)

    h = lrelu(jnp.dot(x_ref[...], w1_ref[...],
                      preferred_element_type=jnp.float32) + b1_ref[...])
    h = lrelu(jnp.dot(h, w2_ref[...],
                      preferred_element_type=jnp.float32) + b2_ref[...])
    h = lrelu(jnp.dot(h, w3_ref[...],
                      preferred_element_type=jnp.float32) + b3_ref[...])
    h = lrelu(jnp.dot(h, w4_ref[...],
                      preferred_element_type=jnp.float32) + b4_ref[...])

    # Single lane-dense output: [B_tile, backcast_len + forecast_len].
    out_ref[...] = jnp.dot(h, wout_ref[...], preferred_element_type=jnp.float32)


def _seasonality_basis(thetas_dim, horizon):
    """S matrix of SeasonalityBlock.seasonalityModel: [thetasDim, horizon]."""
    linspace = jnp.arange(horizon, dtype=jnp.float32) / horizon
    p = thetas_dim
    p1, p2 = (p // 2, p // 2) if p % 2 == 0 else (p // 2, p // 2 + 1)
    i1 = jnp.arange(p1, dtype=jnp.float32)[:, None]
    i2 = jnp.arange(p2, dtype=jnp.float32)[:, None]
    s1 = jnp.cos(2.0 * math.pi * i1 * linspace[None, :])
    s2 = jnp.sin(2.0 * math.pi * i2 * linspace[None, :])
    return jnp.concatenate([s1, s2], axis=0).astype(jnp.float32)


def seasonality_block_forward(x, params, s_back, s_fore, *, tile_b=256):
    """Batch-tiled Pallas call.  Weights are VMEM-resident across grid steps."""
    B, backcast_len = x.shape
    forecast_len = s_fore.shape[1]
    units = params["w1"].shape[1]
    out_width = backcast_len + forecast_len

    # Fold the shared (bias-free) theta projection into the basis matrices and
    # merge backcast/forecast into one lane-dense output weight.
    #   theta @ S == h @ (w_theta @ S)   (benign reassociation)
    w_out = jnp.concatenate(
        [params["w_theta"] @ s_back, params["w_theta"] @ s_fore], axis=1
    ).astype(jnp.float32)                                   # [units, out_width]

    tb = min(tile_b, B)
    if B % tb != 0:
        # Keep the whole batch in one program for ragged small batches; at
        # production sizes pick tile_b to divide B (multiple of 8 sublanes).
        tb = B
    grid = (pl.cdiv(B, tb),)

    def row_map(i):
        return (i, 0)

    def fixed_map(i):
        return (0, 0)

    weights = (
        params["w1"], params["b1"],
        params["w2"], params["b2"],
        params["w3"], params["b3"],
        params["w4"], params["b4"],
        w_out,
    )
    in_specs = [pl.BlockSpec((tb, backcast_len), row_map)] + [
        pl.BlockSpec(w.shape, fixed_map) for w in weights
    ]
    out_specs = pl.BlockSpec((tb, out_width), row_map)

    flops = 2 * B * (backcast_len * units + 3 * units * units + units * out_width)
    weight_elems = (backcast_len * units + 3 * units * units + 4 * units
                    + units * out_width)
    bytes_accessed = 4 * (B * backcast_len + weight_elems + B * out_width)

    out = pl.pallas_call(
        _seasonality_kernel,
        out_shape=jax.ShapeDtypeStruct((B, out_width), jnp.float32),
        grid=grid,
        in_specs=in_specs,
        out_specs=out_specs,
        compiler_params=pltpu.CompilerParams(
            dimension_semantics=("parallel",)),
        cost_estimate=pl.CostEstimate(
            flops=flops, transcendentals=0, bytes_accessed=bytes_accessed),
    )(x, *weights)

    return out[:, :backcast_len], out[:, backcast_len:]


def init_params(key, units, backcast_len, thetas_dim):
    """Deterministic synthetic parameters (PyTorch Linear shapes, stored [in,out])."""
    ks = jax.random.split(key, 5)

    def linear(k, fan_in, fan_out):
        # Uniform(-1/sqrt(fan_in), 1/sqrt(fan_in)), like torch default.
        bound = 1.0 / math.sqrt(fan_in)
        kw, kb = jax.random.split(k)
        w = jax.random.uniform(kw, (fan_in, fan_out), jnp.float32, -bound, bound)
        b = jax.random.uniform(kb, (1, fan_out), jnp.float32, -bound, bound)
        return w, b

    w1, b1 = linear(ks[0], backcast_len, units)   # fc1
    w2, b2 = linear(ks[1], units, units)          # fc2
    w3, b3 = linear(ks[2], units, units)          # fc3
    w4, b4 = linear(ks[3], units, units)          # fc4
    bound = 1.0 / math.sqrt(units)
    w_theta = jax.random.uniform(ks[4], (units, thetas_dim), jnp.float32,
                                 -bound, bound)   # thetaBackcastFc == thetaForecastFc
    return {
        "w1": w1, "b1": b1, "w2": w2, "b2": b2,
        "w3": w3, "b3": b3, "w4": w4, "b4": b4,
        "w_theta": w_theta,
    }


def reference_forward(x, params, s_back, s_fore):
    """Pure-JAX reference mirroring the PyTorch module (unfused theta path)."""
    def lrelu(v):
        return jnp.where(v > 0, v, NEG_SLOPE * v)

    h = lrelu(x @ params["w1"] + params["b1"])
    h = lrelu(h @ params["w2"] + params["b2"])
    h = lrelu(h @ params["w3"] + params["b3"])
    h = lrelu(h @ params["w4"] + params["b4"])
    theta = h @ params["w_theta"]
    return theta @ s_back, theta @ s_fore


if __name__ == "__main__":
    # Shapes consistent with SeasonalityBlock.postInit:
    #   units=32, backcastLength=16, forecastLength=8,
    #   harmonicsNum=None -> thetasDim = forecastLength = 8.
    B = 16
    units = 32
    backcast_len = 16
    forecast_len = 8
    thetas_dim = forecast_len  # harmonicsNum or forecastLength

    key = jax.random.PRNGKey(0)
    kx, kp = jax.random.split(key)
    x = jax.random.normal(kx, (B, backcast_len), dtype=jnp.float32)
    params = init_params(kp, units, backcast_len, thetas_dim)

    s_back = _seasonality_basis(thetas_dim, backcast_len)   # [thetasDim, backcastLength]
    s_fore = _seasonality_basis(thetas_dim, forecast_len)   # [thetasDim, forecastLength]

    # tile_b=8 -> grid of 2 steps, exercising the batch-tiled / parallel path.
    backcast, forecast = seasonality_block_forward(x, params, s_back, s_fore,
                                                   tile_b=8)
    backcast = jax.block_until_ready(backcast)
    forecast = jax.block_until_ready(forecast)

    # Correctness check against pure-JAX reference (unfused, matches PyTorch).
    ref_back, ref_fore = reference_forward(x, params, s_back, s_fore)
    assert backcast.shape == (B, backcast_len)
    assert forecast.shape == (B, forecast_len)
    assert jnp.allclose(backcast, ref_back, atol=1e-4, rtol=1e-4)
    assert jnp.allclose(forecast, ref_fore, atol=1e-4, rtol=1e-4)

    print("KERNEL_OK")
</pallas_src>

<mosaic_0001>
module attributes {stable_mosaic.version = 11 : i64} {
  func.func @_seasonality_kernel(%arg0: i32, %arg1: memref<8x16xf32, #tpu.memory_space<vmem>>, %arg2: memref<16x32xf32, #tpu.memory_space<vmem>>, %arg3: memref<1x32xf32, #tpu.memory_space<vmem>>, %arg4: memref<32x32xf32, #tpu.memory_space<vmem>>, %arg5: memref<1x32xf32, #tpu.memory_space<vmem>>, %arg6: memref<32x32xf32, #tpu.memory_space<vmem>>, %arg7: memref<1x32xf32, #tpu.memory_space<vmem>>, %arg8: memref<32x32xf32, #tpu.memory_space<vmem>>, %arg9: memref<1x32xf32, #tpu.memory_space<vmem>>, %arg10: memref<32x24xf32, #tpu.memory_space<vmem>>, %arg11: memref<8x24xf32, #tpu.memory_space<vmem>>) attributes {dimension_semantics = [#tpu.dimension_semantics<parallel>], iteration_bounds = array<i64: 2>, scalar_prefetch = 0 : i64, scratch_operands = 0 : i64, tpu.core_type = #tpu.core_type<tc>, window_params = [{transform_indices = @transform_0, window_bounds = array<i64: 8, 16>}, {pipeline_mode = #tpu.pipeline_mode<synchronous>, transform_indices = @transform_1, window_bounds = array<i64: 16, 32>}, {pipeline_mode = #tpu.pipeline_mode<synchronous>, transform_indices = @transform_2, window_bounds = array<i64: 1, 32>}, {pipeline_mode = #tpu.pipeline_mode<synchronous>, transform_indices = @transform_3, window_bounds = array<i64: 32, 32>}, {pipeline_mode = #tpu.pipeline_mode<synchronous>, transform_indices = @transform_4, window_bounds = array<i64: 1, 32>}, {pipeline_mode = #tpu.pipeline_mode<synchronous>, transform_indices = @transform_5, window_bounds = array<i64: 32, 32>}, {pipeline_mode = #tpu.pipeline_mode<synchronous>, transform_indices = @transform_6, window_bounds = array<i64: 1, 32>}, {pipeline_mode = #tpu.pipeline_mode<synchronous>, transform_indices = @transform_7, window_bounds = array<i64: 32, 32>}, {pipeline_mode = #tpu.pipeline_mode<synchronous>, transform_indices = @transform_8, window_bounds = array<i64: 1, 32>}, {pipeline_mode = #tpu.pipeline_mode<synchronous>, transform_indices = @transform_9, window_bounds = array<i64: 32, 24>}, {transform_indices = @transform_10, window_bounds = array<i64: 8, 24>}]} {
    %c0 = arith.constant 0 : index
    %c0_0 = arith.constant 0 : index
    %0 = vector.load %arg1[%c0, %c0_0] : memref<8x16xf32, #tpu.memory_space<vmem>>, vector<8x16xf32>
    %c0_1 = arith.constant 0 : index
    %c0_2 = arith.constant 0 : index
    %1 = vector.load %arg2[%c0_1, %c0_2] : memref<16x32xf32, #tpu.memory_space<vmem>>, vector<16x32xf32>
    %cst = arith.constant dense<0.000000e+00> : vector<8x32xf32>
    %2 = tpu.matmul %0, %1, %cst {dimension_numbers = #tpu.dot_dimension_numbers<[1], [0], [0], [1], [0, 0, 1, 1], [], []>} : vector<8x16xf32>, vector<16x32xf32>, vector<8x32xf32> -> vector<8x32xf32>
    %c0_3 = arith.constant 0 : index
    %c0_4 = arith.constant 0 : index
    %3 = vector.load %arg3[%c0_3, %c0_4] : memref<1x32xf32, #tpu.memory_space<vmem>>, vector<1x32xf32>
    %4 = vector.broadcast %3 : vector<1x32xf32> to vector<8x32xf32>
    %5 = arith.addf %2, %4 : vector<8x32xf32>
    %cst_5 = arith.constant 0.000000e+00 : f32
    %6 = vector.broadcast %cst_5 : f32 to vector<8x32xf32>
    %7 = arith.cmpf ogt, %5, %6 : vector<8x32xf32>
    %cst_6 = arith.constant 5.000000e-02 : f32
    %8 = vector.broadcast %cst_6 : f32 to vector<8x32xf32>
    %9 = arith.mulf %8, %5 : vector<8x32xf32>
    %10 = arith.select %7, %5, %9 : vector<8x32xi1>, vector<8x32xf32>
    %c0_7 = arith.constant 0 : index
    %c0_8 = arith.constant 0 : index
    %11 = vector.load %arg4[%c0_7, %c0_8] : memref<32x32xf32, #tpu.memory_space<vmem>>, vector<32x32xf32>
    %cst_9 = arith.constant dense<0.000000e+00> : vector<8x32xf32>
    %12 = tpu.matmul %10, %11, %cst_9 {dimension_numbers = #tpu.dot_dimension_numbers<[1], [0], [0], [1], [0, 0, 1, 1], [], []>} : vector<8x32xf32>, vector<32x32xf32>, vector<8x32xf32> -> vector<8x32xf32>
    %c0_10 = arith.constant 0 : index
    %c0_11 = arith.constant 0 : index
    %13 = vector.load %arg5[%c0_10, %c0_11] : memref<1x32xf32, #tpu.memory_space<vmem>>, vector<1x32xf32>
    %14 = vector.broadcast %13 : vector<1x32xf32> to vector<8x32xf32>
    %15 = arith.addf %12, %14 : vector<8x32xf32>
    %cst_12 = arith.constant 0.000000e+00 : f32
    %16 = vector.broadcast %cst_12 : f32 to vector<8x32xf32>
    %17 = arith.cmpf ogt, %15, %16 : vector<8x32xf32>
    %cst_13 = arith.constant 5.000000e-02 : f32
    %18 = vector.broadcast %cst_13 : f32 to vector<8x32xf32>
    %19 = arith.mulf %18, %15 : vector<8x32xf32>
    %20 = arith.select %17, %15, %19 : vector<8x32xi1>, vector<8x32xf32>
    %c0_14 = arith.constant 0 : index
    %c0_15 = arith.constant 0 : index
    %21 = vector.load %arg6[%c0_14, %c0_15] : memref<32x32xf32, #tpu.memory_space<vmem>>, vector<32x32xf32>
    %cst_16 = arith.constant dense<0.000000e+00> : vector<8x32xf32>
    %22 = tpu.matmul %20, %21, %cst_16 {dimension_numbers = #tpu.dot_dimension_numbers<[1], [0], [0], [1], [0, 0, 1, 1], [], []>} : vector<8x32xf32>, vector<32x32xf32>, vector<8x32xf32> -> vector<8x32xf32>
    %c0_17 = arith.constant 0 : index
    %c0_18 = arith.constant 0 : index
    %23 = vector.load %arg7[%c0_17, %c0_18] : memref<1x32xf32, #tpu.memory_space<vmem>>, vector<1x32xf32>
    %24 = vector.broadcast %23 : vector<1x32xf32> to vector<8x32xf32>
    %25 = arith.addf %22, %24 : vector<8x32xf32>
    %cst_19 = arith.constant 0.000000e+00 : f32
    %26 = vector.broadcast %cst_19 : f32 to vector<8x32xf32>
    %27 = arith.cmpf ogt, %25, %26 : vector<8x32xf32>
    %cst_20 = arith.constant 5.000000e-02 : f32
    %28 = vector.broadcast %cst_20 : f32 to vector<8x32xf32>
    %29 = arith.mulf %28, %25 : vector<8x32xf32>
    %30 = arith.select %27, %25, %29 : vector<8x32xi1>, vector<8x32xf32>
    %c0_21 = arith.constant 0 : index
    %c0_22 = arith.constant 0 : index
    %31 = vector.load %arg8[%c0_21, %c0_22] : memref<32x32xf32, #tpu.memory_space<vmem>>, vector<32x32xf32>
    %cst_23 = arith.constant dense<0.000000e+00> : vector<8x32xf32>
    %32 = tpu.matmul %30, %31, %cst_23 {dimension_numbers = #tpu.dot_dimension_numbers<[1], [0], [0], [1], [0, 0, 1, 1], [], []>} : vector<8x32xf32>, vector<32x32xf32>, vector<8x32xf32> -> vector<8x32xf32>
    %c0_24 = arith.constant 0 : index
    %c0_25 = arith.constant 0 : index
    %33 = vector.load %arg9[%c0_24, %c0_25] : memref<1x32xf32, #tpu.memory_space<vmem>>, vector<1x32xf32>
    %34 = vector.broadcast %33 : vector<1x32xf32> to vector<8x32xf32>
    %35 = arith.addf %32, %34 : vector<8x32xf32>
    %cst_26 = arith.constant 0.000000e+00 : f32
    %36 = vector.broadcast %cst_26 : f32 to vector<8x32xf32>
    %37 = arith.cmpf ogt, %35, %36 : vector<8x32xf32>
    %cst_27 = arith.constant 5.000000e-02 : f32
    %38 = vector.broadcast %cst_27 : f32 to vector<8x32xf32>
    %39 = arith.mulf %38, %35 : vector<8x32xf32>
    %40 = arith.select %37, %35, %39 : vector<8x32xi1>, vector<8x32xf32>
    %c0_28 = arith.constant 0 : index
    %c0_29 = arith.constant 0 : index
    %41 = vector.load %arg10[%c0_28, %c0_29] : memref<32x24xf32, #tpu.memory_space<vmem>>, vector<32x24xf32>
    %cst_30 = arith.constant dense<0.000000e+00> : vector<8x24xf32>
    %42 = tpu.matmul %40, %41, %cst_30 {dimension_numbers = #tpu.dot_dimension_numbers<[1], [0], [0], [1], [0, 0, 1, 1], [], []>} : vector<8x32xf32>, vector<32x24xf32>, vector<8x24xf32> -> vector<8x24xf32>
    %c0_31 = arith.constant 0 : index
    %c0_32 = arith.constant 0 : index
    %43 = vector.load %arg11[%c0_31, %c0_32] : memref<8x24xf32, #tpu.memory_space<vmem>>, vector<8x24xf32>
    tpu.vector_store %arg11[%c0_31, %c0_32], %42 {strides = array<i32>} : memref<8x24xf32, #tpu.memory_space<vmem>>, vector<8x24xf32>,
    return
  }
  func.func @transform_0(%arg0: i32) -> (i32, i32) {
    %c0_i32 = arith.constant 0 : i32
    %c0_i32_0 = arith.constant 0 : i32
    return %arg0, %c0_i32 : i32, i32
  }
  func.func @transform_1(%arg0: i32) -> (i32, i32) {
    %c0_i32 = arith.constant 0 : i32
    %c0_i32_0 = arith.constant 0 : i32
    %c0_i32_1 = arith.constant 0 : i32
    return %c0_i32, %c0_i32_0 : i32, i32
  }
  func.func @transform_2(%arg0: i32) -> (i32, i32) {
    %c0_i32 = arith.constant 0 : i32
    %c0_i32_0 = arith.constant 0 : i32
    %c0_i32_1 = arith.constant 0 : i32
    return %c0_i32, %c0_i32_0 : i32, i32
  }
  func.func @transform_3(%arg0: i32) -> (i32, i32) {
    %c0_i32 = arith.constant 0 : i32
    %c0_i32_0 = arith.constant 0 : i32
    %c0_i32_1 = arith.constant 0 : i32
    return %c0_i32, %c0_i32_0 : i32, i32
  }
  func.func @transform_4(%arg0: i32) -> (i32, i32) {
    %c0_i32 = arith.constant 0 : i32
    %c0_i32_0 = arith.constant 0 : i32
    %c0_i32_1 = arith.constant 0 : i32
    return %c0_i32, %c0_i32_0 : i32, i32
  }
  func.func @transform_5(%arg0: i32) -> (i32, i32) {
    %c0_i32 = arith.constant 0 : i32
    %c0_i32_0 = arith.constant 0 : i32
    %c0_i32_1 = arith.constant 0 : i32
    return %c0_i32, %c0_i32_0 : i32, i32
  }
  func.func @transform_6(%arg0: i32) -> (i32, i32) {
    %c0_i32 = arith.constant 0 : i32
    %c0_i32_0 = arith.constant 0 : i32
    %c0_i32_1 = arith.constant 0 : i32
    return %c0_i32, %c0_i32_0 : i32, i32
  }
  func.func @transform_7(%arg0: i32) -> (i32, i32) {
    %c0_i32 = arith.constant 0 : i32
    %c0_i32_0 = arith.constant 0 : i32
    %c0_i32_1 = arith.constant 0 : i32
    return %c0_i32, %c0_i32_0 : i32, i32
  }
  func.func @transform_8(%arg0: i32) -> (i32, i32) {
    %c0_i32 = arith.constant 0 : i32
    %c0_i32_0 = arith.constant 0 : i32
    %c0_i32_1 = arith.constant 0 : i32
    return %c0_i32, %c0_i32_0 : i32, i32
  }
  func.func @transform_9(%arg0: i32) -> (i32, i32) {
    %c0_i32 = arith.constant 0 : i32
    %c0_i32_0 = arith.constant 0 : i32
    %c0_i32_1 = arith.constant 0 : i32
    return %c0_i32, %c0_i32_0 : i32, i32
  }
  func.func @transform_10(%arg0: i32) -> (i32, i32) {
    %c0_i32 = arith.constant 0 : i32
    %c0_i32_0 = arith.constant 0 : i32
    return %arg0, %c0_i32 : i32, i32
  }
}

</mosaic_0001>

<llo_original>
// kernel: tpu_custom_call.1
$region0: #{tpu_custom_call.1}
  #allocation0 [shape = 'u32[]', space=smem, size = 0x4, offset = 0x4, fixed_abs, tag = 'smem constant byte address 0x4 - core index']
  #allocation1 [shape = 'u32[144,128]{1,0:T(1,128)}', space=vmem, size = 0x12000, scoped, tag = 'internal scratch']
  %s0 = inlined_call_operand.hbm [shape: f32[16,16], index: 0, kind: input, shape index: {}]
  %s1 = inlined_call_operand.hbm [shape: f32[16,32], index: 1, kind: input, shape index: {}]
  %s2 = inlined_call_operand.vmem [shape: f32[1,32], index: 2, kind: input, shape index: {}]
  %s3 = inlined_call_operand.vmem [shape: f32[32,32], index: 3, kind: input, shape index: {}]
  %s4 = inlined_call_operand.vmem [shape: f32[1,32], index: 4, kind: input, shape index: {}]
  %s5 = inlined_call_operand.vmem [shape: f32[32,32], index: 5, kind: input, shape index: {}]
  %s6 = inlined_call_operand.hbm [shape: f32[1,32], index: 6, kind: input, shape index: {}]
  %s7 = inlined_call_operand.hbm [shape: f32[32,32], index: 7, kind: input, shape index: {}]
  %s8 = inlined_call_operand.hbm [shape: f32[1,32], index: 8, kind: input, shape index: {}]
  %s9 = inlined_call_operand.vmem [shape: f32[32,24], index: 9, kind: input, shape index: {}]
  %s10 = inlined_call_operand.hbm [shape: f32[16,24], index: 10, kind: output, shape index: {}]
  %s11 = sld [smem:[#allocation0]]
  $region93: #{tpu_custom_call.1} parent=0
    _
  %s13 = ssub.s32 1, %s11
  %s14 = scalar_select 0, %s13, %s11
  $region1: #{tpu_custom_call.1} parent=0
    #allocation2 [shape = 'u8[8192]{0}', space=vmem, size = 0x2000, scoped, tag = 'input window, operand 0']
    #allocation3 [shape = 's32[2]{0}', space=sflag, size = 0x8, scoped, tag = 'scoped memory for tpu_custom_call.1']
    #allocation4 [shape = 's32[2]{0}', space=sflag, size = 0x8, scoped, tag = 'scoped memory for tpu_custom_call.1']
    #allocation5 [shape = 'u8[8192]{0}', space=vmem, size = 0x2000, scoped, tag = 'input window, operand 1, single buffered']
    #allocation6 [shape = 's32[1]{0}', space=sflag, size = 0x4, scoped, tag = 'scoped memory for tpu_custom_call.1']
    #allocation7 [shape = 'u8[512]{0}', space=vmem, size = 0x400, scoped, tag = 'input window, operand 6, single buffered']
    #allocation8 [shape = 'u8[16384]{0}', space=vmem, size = 0x4000, scoped, tag = 'input window, operand 7, single buffered']
    #allocation9 [shape = 's32[1]{0}', space=sflag, size = 0x4, scoped, tag = 'scoped memory for tpu_custom_call.1']
    #allocation10 [shape = 'u8[512]{0}', space=vmem, size = 0x400, scoped, tag = 'input window, operand 8, single buffered']
    #allocation11 [shape = 'u8[8192]{0}', space=vmem, size = 0x2000, scoped, tag = 'output window, operand 0']
    %15 = vsyncpa [#allocation3], 0
    %s16 = scalar_lea.sflag [#allocation3], 1
    %17 = vsyncpa %s16, 0
    %18 = vsyncpa [#allocation6], 0
    %19 = vsyncpa [#allocation9], 0
    %20 = vsyncpa [#allocation4], 0
    %s21 = scalar_lea.sflag [#allocation4], 1
    %22 = vsyncpa %s21, 0
    loop: start=0, step=1, limit=4
    $region2: #{tpu_custom_call.1} parent=1 // loop_pre_header
      _
    $region3: #{tpu_custom_call.1} parent=1 // loop_header
      %s24 = sphi 0, %s28
      %p25 = scmp.ge.s32.totalorder %s24, 4
      %s34 = sphi 0, %s36
      %s37 = sphi 0, %s34
      %s38 = sphi 0, %s37
      %s54 = sphi 0, %s38
      %s58 = sphi 0, %s58
      %s60 = sphi 0, %s58
      %s61 = sphi 0, %s60
      %s75 = sphi 0, %s61
      %s79 = sphi 0, %s79
      %s81 = sphi 0, %s79
      %s82 = sphi 0, %s81
      %s96 = sphi 0, %s82
      %s100 = sphi 0, %s100
      %s102 = sphi 0, %s100
      %s103 = sphi 0, %s102
      %s117 = sphi 0, %s103
      %s121 = sphi 0, %s121
      %s123 = sphi 0, %s121
      %s124 = sphi 0, %s123
      %s138 = sphi 0, %s124
      %s142 = sphi 0, %s142
      %s144 = sphi 0, %s142
      %s145 = sphi 0, %s144
      %s159 = sphi 0, %s145
      %s163 = sphi 0, %s163
      %s165 = sphi 0, %s163
      %s166 = sphi 0, %s165
      %s180 = sphi 0, %s166
      %s184 = sphi 0, %s184
      %s186 = sphi 0, %s184
      %s187 = sphi 0, %s186
      %s201 = sphi 0, %s187
      %s205 = sphi 0, %s205
      %s207 = sphi 0, %s205
      %s208 = sphi 0, %s207
      %s222 = sphi 0, %s208
      %s226 = sphi 0, %s226
      %s228 = sphi 0, %s226
      %s229 = sphi 0, %s228
      %s243 = sphi 0, %s229
      %s249 = sphi 0, %s251
      %s252 = sphi 0, %s249
      %s253 = sphi 0, %s252
      %s269 = sphi 0, %s253
    $region4: #{tpu_custom_call.1} parent=1 // loop_header_branch
      %27 = sbr.rel (%p25) target = $region8
    $region5: #{tpu_custom_call.1} parent=1 // loop_body
      %s29 = ssub.s32 %s24, 1
      %s30 = ssub.s32 %s24, 2
      %s31 = sadd.s32 %s24, 1
      %s32 = ssub.s32 %s24, %s31
      %p33 = scmp.eq.s32.totalorder %s32, 0
      %s35 = sadd.s32 %s34, 1
      %s36 = scalar_select %p33, %s34, %s35
      %p39 = pneg %p33
      %p40 = scmp.eq.s32.totalorder %s24, 1
      %p41 = por %p39, %p40
      %p42 = scmp.ne.s32.totalorder %s34, %s37
      %p43 = scmp.eq.s32.totalorder %s24, 0
      %p44 = por %p42, %p43
      %p45 = scmp.ne.s32.totalorder %s34, %s37
      %p46 = scmp.eq.s32.totalorder %s29, 1
      %p47 = por %p45, %p46
      %p48 = scmp.ne.s32.totalorder %s37, %s38
      %p49 = scmp.eq.s32.totalorder %s29, 0
      %p50 = por %p48, %p49
      %p51 = scmp.ne.s32.totalorder %s37, %s38
      %p52 = scmp.eq.s32.totalorder %s30, 1
      %p53 = por %p51, %p52
      %p55 = scmp.ne.s32.totalorder %s38, %s54
      %p56 = scmp.eq.s32.totalorder %s30, 0
      %p57 = por %p55, %p56
      %s59 = sadd.s32 %s58, 1
      %p62 = scmp.eq.s32.totalorder %s24, 1
      %p63 = scmp.ne.s32.totalorder %s58, %s60
      %p64 = scmp.eq.s32.totalorder %s24, 0
      %p65 = por %p63, %p64
      %p66 = scmp.ne.s32.totalorder %s58, %s60
      %p67 = scmp.eq.s32.totalorder %s29, 1
      %p68 = por %p66, %p67
      %p69 = scmp.ne.s32.totalorder %s60, %s61
      %p70 = scmp.eq.s32.totalorder %s29, 0
      %p71 = por %p69, %p70
      %p72 = scmp.ne.s32.totalorder %s60, %s61
      %p73 = scmp.eq.s32.totalorder %s30, 1
      %p74 = por %p72, %p73
      %p76 = scmp.ne.s32.totalorder %s61, %s75
      %p77 = scmp.eq.s32.totalorder %s30, 0
      %p78 = por %p76, %p77
      %s80 = sadd.s32 %s79, 1
      %p83 = scmp.eq.s32.totalorder %s24, 1
      %p84 = scmp.ne.s32.totalorder %s79, %s81
      %p85 = scmp.eq.s32.totalorder %s24, 0
      %p86 = por %p84, %p85
      %p87 = scmp.ne.s32.totalorder %s79, %s81
      %p88 = scmp.eq.s32.totalorder %s29, 1
      %p89 = por %p87, %p88
      %p90 = scmp.ne.s32.totalorder %s81, %s82
      %p91 = scmp.eq.s32.totalorder %s29, 0
      %p92 = por %p90, %p91
      %p93 = scmp.ne.s32.totalorder %s81, %s82
      %p94 = scmp.eq.s32.totalorder %s30, 1
      %p95 = por %p93, %p94
      %p97 = scmp.ne.s32.totalorder %s82, %s96
      %p98 = scmp.eq.s32.totalorder %s30, 0
      %p99 = por %p97, %p98
      %s101 = sadd.s32 %s100, 1
      %p104 = scmp.eq.s32.totalorder %s24, 1
      %p105 = scmp.ne.s32.totalorder %s100, %s102
      %p106 = scmp.eq.s32.totalorder %s24, 0
      %p107 = por %p105, %p106
      %p108 = scmp.ne.s32.totalorder %s100, %s102
      %p109 = scmp.eq.s32.totalorder %s29, 1
      %p110 = por %p108, %p109
      %p111 = scmp.ne.s32.totalorder %s102, %s103
      %p112 = scmp.eq.s32.totalorder %s29, 0
      %p113 = por %p111, %p112
      %p114 = scmp.ne.s32.totalorder %s102, %s103
      %p115 = scmp.eq.s32.totalorder %s30, 1
      %p116 = por %p114, %p115
      %p118 = scmp.ne.s32.totalorder %s103, %s117
      %p119 = scmp.eq.s32.totalorder %s30, 0
      %p120 = por %p118, %p119
      %s122 = sadd.s32 %s121, 1
      %p125 = scmp.eq.s32.totalorder %s24, 1
      %p126 = scmp.ne.s32.totalorder %s121, %s123
      %p127 = scmp.eq.s32.totalorder %s24, 0
      %p128 = por %p126, %p127
      %p129 = scmp.ne.s32.totalorder %s121, %s123
      %p130 = scmp.eq.s32.totalorder %s29, 1
      %p131 = por %p129, %p130
      %p132 = scmp.ne.s32.totalorder %s123, %s124
      %p133 = scmp.eq.s32.totalorder %s29, 0
      %p134 = por %p132, %p133
      %p135 = scmp.ne.s32.totalorder %s123, %s124
      %p136 = scmp.eq.s32.totalorder %s30, 1
      %p137 = por %p135, %p136
      %p139 = scmp.ne.s32.totalorder %s124, %s138
      %p140 = scmp.eq.s32.totalorder %s30, 0
      %p141 = por %p139, %p140
      %s143 = sadd.s32 %s142, 1
      %p146 = scmp.eq.s32.totalorder %s24, 1
      %p147 = scmp.ne.s32.totalorder %s142, %s144
      %p148 = scmp.eq.s32.totalorder %s24, 0
      %p149 = por %p147, %p148
      %p150 = scmp.ne.s32.totalorder %s142, %s144
      %p151 = scmp.eq.s32.totalorder %s29, 1
      %p152 = por %p150, %p151
      %p153 = scmp.ne.s32.totalorder %s144, %s145
      %p154 = scmp.eq.s32.totalorder %s29, 0
      %p155 = por %p153, %p154
      %p156 = scmp.ne.s32.totalorder %s144, %s145
      %p157 = scmp.eq.s32.totalorder %s30, 1
      %p158 = por %p156, %p157
      %p160 = scmp.ne.s32.totalorder %s145, %s159
      %p161 = scmp.eq.s32.totalorder %s30, 0
      %p162 = por %p160, %p161
      %s164 = sadd.s32 %s163, 1
      %p167 = scmp.eq.s32.totalorder %s24, 1
      %p168 = scmp.ne.s32.totalorder %s163, %s165
      %p169 = scmp.eq.s32.totalorder %s24, 0
      %p170 = por %p168, %p169
      %p171 = scmp.ne.s32.totalorder %s163, %s165
      %p172 = scmp.eq.s32.totalorder %s29, 1
      %p173 = por %p171, %p172
      %p174 = scmp.ne.s32.totalorder %s165, %s166
      %p175 = scmp.eq.s32.totalorder %s29, 0
      %p176 = por %p174, %p175
      %p177 = scmp.ne.s32.totalorder %s165, %s166
      %p178 = scmp.eq.s32.totalorder %s30, 1
      %p179 = por %p177, %p178
      %p181 = scmp.ne.s32.totalorder %s166, %s180
      %p182 = scmp.eq.s32.totalorder %s30, 0
      %p183 = por %p181, %p182
      %s185 = sadd.s32 %s184, 1
      %p188 = scmp.eq.s32.totalorder %s24, 1
      %p189 = scmp.ne.s32.totalorder %s184, %s186
      %p190 = scmp.eq.s32.totalorder %s24, 0
      %p191 = por %p189, %p190
      %p192 = scmp.ne.s32.totalorder %s184, %s186
      %p193 = scmp.eq.s32.totalorder %s29, 1
      %p194 = por %p192, %p193
      %p195 = scmp.ne.s32.totalorder %s186, %s187
      %p196 = scmp.eq.s32.totalorder %s29, 0
      %p197 = por %p195, %p196
      %p198 = scmp.ne.s32.totalorder %s186, %s187
      %p199 = scmp.eq.s32.totalorder %s30, 1
      %p200 = por %p198, %p199
      %p202 = scmp.ne.s32.totalorder %s187, %s201
      %p203 = scmp.eq.s32.totalorder %s30, 0
      %p204 = por %p202, %p203
      %s206 = sadd.s32 %s205, 1
      %p209 = scmp.eq.s32.totalorder %s24, 1
      %p210 = scmp.ne.s32.totalorder %s205, %s207
      %p211 = scmp.eq.s32.totalorder %s24, 0
      %p212 = por %p210, %p211
      %p213 = scmp.ne.s32.totalorder %s205, %s207
      %p214 = scmp.eq.s32.totalorder %s29, 1
      %p215 = por %p213, %p214
      %p216 = scmp.ne.s32.totalorder %s207, %s208
      %p217 = scmp.eq.s32.totalorder %s29, 0
      %p218 = por %p216, %p217
      %p219 = scmp.ne.s32.totalorder %s207, %s208
      %p220 = scmp.eq.s32.totalorder %s30, 1
      %p221 = por %p219, %p220
      %p223 = scmp.ne.s32.totalorder %s208, %s222
      %p224 = scmp.eq.s32.totalorder %s30, 0
      %p225 = por %p223, %p224
      %s227 = sadd.s32 %s226, 1
      %p230 = scmp.eq.s32.totalorder %s24, 1
      %p231 = scmp.ne.s32.totalorder %s226, %s228
      %p232 = scmp.eq.s32.totalorder %s24, 0
      %p233 = por %p231, %p232
      %p234 = scmp.ne.s32.totalorder %s226, %s228
      %p235 = scmp.eq.s32.totalorder %s29, 1
      %p236 = por %p234, %p235
      %p237 = scmp.ne.s32.totalorder %s228, %s229
      %p238 = scmp.eq.s32.totalorder %s29, 0
      %p239 = por %p237, %p238
      %p240 = scmp.ne.s32.totalorder %s228, %s229
      %p241 = scmp.eq.s32.totalorder %s30, 1
      %p242 = por %p240, %p241
      %p244 = scmp.ne.s32.totalorder %s229, %s243
      %p245 = scmp.eq.s32.totalorder %s30, 0
      %p246 = por %p244, %p245
      %s247 = ssub.s32 %s24, %s31
      %p248 = scmp.eq.s32.totalorder %s247, 0
      %s250 = sadd.s32 %s249, 1
      %s251 = scalar_select %p248, %s249, %s250
      %p254 = pneg %p248
      %p255 = scmp.eq.s32.totalorder %s24, 1
      %p256 = por %p254, %p255
      %p257 = scmp.ne.s32.totalorder %s249, %s252
      %p258 = scmp.eq.s32.totalorder %s24, 0
      %p259 = por %p257, %p258
      %p260 = scmp.ne.s32.totalorder %s249, %s252
      %p261 = scmp.eq.s32.totalorder %s29, 1
      %p262 = por %p260, %p261
      %p263 = scmp.ne.s32.totalorder %s252, %s253
      %p264 = scmp.eq.s32.totalorder %s29, 0
      %p265 = por %p263, %p264
      %p266 = scmp.ne.s32.totalorder %s252, %s253
      %p267 = scmp.eq.s32.totalorder %s30, 1
      %p268 = por %p266, %p267
      %p270 = scmp.ne.s32.totalorder %s253, %s269
      %p271 = scmp.eq.s32.totalorder %s30, 0
      %p272 = por %p270, %p271
      %p273 = scmp.le.s32.totalorder 1, %s24
      %p274 = scmp.lt.s32.totalorder %s24, 3
      %p275 = pnand %p273, %p274
      %p276 = pneg %p275
      // Predicated region
      $region9: #{tpu_custom_call.1} parent=5 // pred_check
        _
      $region10: #{tpu_custom_call.1} parent=5 // pred_check_branch
        %278 = sbr.rel (%p275) target = $region12
      $region11: #{tpu_custom_call.1} parent=5 // pred_region
        %s279 = ssub.s32 %s24, 1
        // Predicated region
        $region13: #{tpu_custom_call.1} parent=11 // pred_check
          %p280 = pneg %p71
        $region14: #{tpu_custom_call.1} parent=11 // pred_check_branch
          %282 = sbr.rel (%p280) target = $region16
        $region15: #{tpu_custom_call.1} parent=11 // pred_region
          %s284 = ssub.s32 256, 256
          %285 = vsyncadd [#allocation6], %s284
          %s286 = sshll.u32 [#allocation5], 4
          %s287 = int_to_ptr.vmem [resolvable:$true] %s286
          %292 = dma.hbm_to_vmem [thread:$0]  %s1, 256, %s287, [#allocation6], 128, 128, 8
        $region16: #{tpu_custom_call.1} parent=11 // pred_fallthru
          _
        // Predicated region
        $region17: #{tpu_custom_call.1} parent=11 // pred_check
          %p293 = pneg %p92
        $region18: #{tpu_custom_call.1} parent=11 // pred_check_branch
          %295 = sbr.rel (%p293) target = $region20
        $region19: #{tpu_custom_call.1} parent=11 // pred_region
          _
        $region20: #{tpu_custom_call.1} parent=11 // pred_fallthru
          _
        // Predicated region
        $region21: #{tpu_custom_call.1} parent=11 // pred_check
          %p296 = pneg %p113
        $region22: #{tpu_custom_call.1} parent=11 // pred_check_branch
          %298 = sbr.rel (%p296) target = $region24
        $region23: #{tpu_custom_call.1} parent=11 // pred_region
          _
        $region24: #{tpu_custom_call.1} parent=11 // pred_fallthru
          _
        // Predicated region
        $region25: #{tpu_custom_call.1} parent=11 // pred_check
          %p299 = pneg %p134
        $region26: #{tpu_custom_call.1} parent=11 // pred_check_branch
          %301 = sbr.rel (%p299) target = $region28
        $region27: #{tpu_custom_call.1} parent=11 // pred_region
          _
        $region28: #{tpu_custom_call.1} parent=11 // pred_fallthru
          _
        // Predicated region
        $region29: #{tpu_custom_call.1} parent=11 // pred_check
          %p302 = pneg %p155
        $region30: #{tpu_custom_call.1} parent=11 // pred_check_branch
          %304 = sbr.rel (%p302) target = $region32
        $region31: #{tpu_custom_call.1} parent=11 // pred_region
          _
        $region32: #{tpu_custom_call.1} parent=11 // pred_fallthru
          _
        // Predicated region
        $region33: #{tpu_custom_call.1} parent=11 // pred_check
          %p305 = pneg %p176
        $region34: #{tpu_custom_call.1} parent=11 // pred_check_branch
          %307 = sbr.rel (%p305) target = $region36
        $region35: #{tpu_custom_call.1} parent=11 // pred_region
          %s309 = ssub.s32 16, 16
          %310 = vsyncadd [#allocation6], %s309
          %s312 = sshll.u32 [#allocation7], 4
          %s313 = int_to_ptr.vmem [resolvable:$true] %s312
          %315 = dma.hbm_to_vmem [thread:$0]  %s6, 16, %s313, [#allocation6]
        $region36: #{tpu_custom_call.1} parent=11 // pred_fallthru
          _
        // Predicated region
        $region37: #{tpu_custom_call.1} parent=11 // pred_check
          %p316 = pneg %p197
        $region38: #{tpu_custom_call.1} parent=11 // pred_check_branch
          %318 = sbr.rel (%p316) target = $region40
        $region39: #{tpu_custom_call.1} parent=11 // pred_region
          %s320 = ssub.s32 512, 512
          %321 = vsyncadd [#allocation9], %s320
          %s322 = sshll.u32 [#allocation8], 4
          %s323 = int_to_ptr.vmem [resolvable:$true] %s322
          %328 = dma.hbm_to_vmem [thread:$0]  %s7, 512, %s323, [#allocation9], 128, 128, 8
        $region40: #{tpu_custom_call.1} parent=11 // pred_fallthru
          _
        // Predicated region
        $region41: #{tpu_custom_call.1} parent=11 // pred_check
          %p329 = pneg %p218
        $region42: #{tpu_custom_call.1} parent=11 // pred_check_branch
          %331 = sbr.rel (%p329) target = $region44
        $region43: #{tpu_custom_call.1} parent=11 // pred_region
          %s333 = ssub.s32 16, 16
          %334 = vsyncadd [#allocation9], %s333
          %s336 = sshll.u32 [#allocation10], 4
          %s337 = int_to_ptr.vmem [resolvable:$true] %s336
          %339 = dma.hbm_to_vmem [thread:$0]  %s8, 16, %s337, [#allocation9]
        $region44: #{tpu_custom_call.1} parent=11 // pred_fallthru
          _
        // Predicated region
        $region45: #{tpu_custom_call.1} parent=11 // pred_check
          %p340 = pneg %p239
        $region46: #{tpu_custom_call.1} parent=11 // pred_check_branch
          %342 = sbr.rel (%p340) target = $region48
        $region47: #{tpu_custom_call.1} parent=11 // pred_region
          _
        $region48: #{tpu_custom_call.1} parent=11 // pred_fallthru
          _
      $region12: #{tpu_custom_call.1} parent=5 // pred_fallthru
        _
      %p343 = scmp.lt.s32.totalorder %s24, 2
      // Predicated region
      $region49: #{tpu_custom_call.1} parent=5 // pred_check
        %p344 = pneg %p343
      $region50: #{tpu_custom_call.1} parent=5 // pred_check_branch
        %346 = sbr.rel (%p344) target = $region52
      $region51: #{tpu_custom_call.1} parent=5 // pred_region
        // Predicated region
        $region53: #{tpu_custom_call.1} parent=51 // pred_check
          %p347 = pneg %p44
        $region54: #{tpu_custom_call.1} parent=51 // pred_check_branch
          %349 = sbr.rel (%p347) target = $region56
        $region55: #{tpu_custom_call.1} parent=51 // pred_region
          %s350 = sand.u32 %s34, 1
          %s351 = scalar_lea.sflag [#allocation3], %s350
          %s352 = sand.u32 %s34, 1
          %s353 = smul.addr %s352, 8
          %s354 = scalar_lea.vmem [#allocation2], %s353
          %s356 = ssub.s32 128, 128
          %357 = vsyncadd %s351, %s356
          %s358 = smul.addr %s24, 128
          %s359 = scalar_lea.hbm %s0, %s358
          %s361 = sshll.u32 %s354, 4
          %s362 = int_to_ptr.vmem [resolvable:$true] %s361
          %364 = dma.hbm_to_vmem [thread:$0]  %s359, 128, %s362, %s351
        $region56: #{tpu_custom_call.1} parent=51 // pred_fallthru
          _
      $region52: #{tpu_custom_call.1} parent=5 // pred_fallthru
        _
      %p365 = scmp.le.s32.totalorder 1, %s24
      %p366 = scmp.lt.s32.totalorder %s24, 3
      %p367 = pnand %p365, %p366
      %p368 = pneg %p367
      // Predicated region
      $region57: #{tpu_custom_call.1} parent=5 // pred_check
        _
      $region58: #{tpu_custom_call.1} parent=5 // pred_check_branch
        %370 = sbr.rel (%p367) target = $region60
      $region59: #{tpu_custom_call.1} parent=5 // pred_region
        %s371 = ssub.s32 %s24, 1
        %s372 = sand.u32 %s37, 1
        %s373 = scalar_lea.sflag [#allocation3], %s372
        %s374 = sand.u32 %s37, 1
        %s375 = smul.addr %s374, 8
        %s376 = scalar_lea.vmem [#allocation2], %s375
        // Predicated region
        $region61: #{tpu_custom_call.1} parent=59 // pred_check
          %p377 = pneg %p50
        $region62: #{tpu_custom_call.1} parent=59 // pred_check_branch
          %379 = sbr.rel (%p377) target = $region64
        $region63: #{tpu_custom_call.1} parent=59 // pred_region
          %380 = dma.done %s373, 128
        $region64: #{tpu_custom_call.1} parent=59 // pred_fallthru
          _
        // Predicated region
        $region65: #{tpu_custom_call.1} parent=59 // pred_check
          %p381 = pneg %p71
        $region66: #{tpu_custom_call.1} parent=59 // pred_check_branch
          %383 = sbr.rel (%p381) target = $region68
        $region67: #{tpu_custom_call.1} parent=59 // pred_region
          %384 = dma.done [#allocation6], 256
        $region68: #{tpu_custom_call.1} parent=59 // pred_fallthru
          _
        // Predicated region
        $region69: #{tpu_custom_call.1} parent=59 // pred_check
          %p385 = pneg %p176
        $region70: #{tpu_custom_call.1} parent=59 // pred_check_branch
          %387 = sbr.rel (%p385) target = $region72
        $region71: #{tpu_custom_call.1} parent=59 // pred_region
          %388 = dma.done [#allocation6], 16
        $region72: #{tpu_custom_call.1} parent=59 // pred_fallthru
          _
        // Predicated region
        $region73: #{tpu_custom_call.1} parent=59 // pred_check
          %p389 = pneg %p197
        $region74: #{tpu_custom_call.1} parent=59 // pred_check_branch
          %391 = sbr.rel (%p389) target = $region76
        $region75: #{tpu_custom_call.1} parent=59 // pred_region
          %392 = dma.done [#allocation9], 512
        $region76: #{tpu_custom_call.1} parent=59 // pred_fallthru
          _
        // Predicated region
        $region77: #{tpu_custom_call.1} parent=59 // pred_check
          %p393 = pneg %p218
        $region78: #{tpu_custom_call.1} parent=59 // pred_check_branch
          %395 = sbr.rel (%p393) target = $region80
        $region79: #{tpu_custom_call.1} parent=59 // pred_region
          %396 = dma.done [#allocation9], 16
        $region80: #{tpu_custom_call.1} parent=59 // pred_fallthru
          _
        %s397 = sand.u32 %s37, 1
        %s398 = scalar_lea.sflag [#allocation3], %s397
        %s399 = sand.u32 %s37, 1
        %s400 = smul.addr %s399, 8
        %s401 = scalar_lea.vmem [#allocation2], %s400
        %p402 = pneg %p50
        %p403 = pneg %p47
        %p404 = pneg %p71
        %p405 = pneg %p68
        %p406 = pneg %p92
        %p407 = pneg %p89
        %p408 = pneg %p113
        %p409 = pneg %p110
        %p410 = pneg %p134
        %p411 = pneg %p131
        %p412 = pneg %p155
        %p413 = pneg %p152
        %p414 = pneg %p176
        %p415 = pneg %p173
        %p416 = pneg %p197
        %p417 = pneg %p194
        %p418 = pneg %p218
        %p419 = pneg %p215
        %p420 = pneg %p239
        %p421 = pneg %p236
        %p422 = pneg %p265
        %p423 = pneg %p262
        %s424 = sand.u32 %s252, 1
        %s425 = scalar_lea.sflag [#allocation4], %s424
        %s426 = sand.u32 %s252, 1
        %s427 = smul.addr %s426, 8
        %s428 = scalar_lea.vmem [#allocation11], %s427
        %v429 = vld [vmem:[%s376] sm:$0xff]
        %v430 = vld [vmem:[#allocation5] sm:$0xff]
        %v431 = vld [vmem:[#allocation5 + $0x8] sm:$0xff]
        %v432 = vld [vmem:[%s2] sm:$0x1]
        %v434 = vlaneseq
        %v435 = vshrl.u32 %v434, 7
        %v436 = vsub.s32 0, %v435
        %v437 = vrot.slane %v432, %v436
        %vm439 = vcmask 130048
        %v441 = vsel %vm439, %v429, 0
        %443 = vmatprep.subr.mxu0 0.0
        %444 = vmatpush1.msra.mxu0 %v430
        %445 = vmatprep.subr.mxu0 0.0
        %446 = vmatpush1.msra.mxu0 %v431
        %447 = vmatprep.subr.mxu0 0.0
        %448 = vmatpush1.msra.mxu0 0.0
        %449 = vmatprep.subr.mxu0 0.0
        %450 = vmatpush1.msra.mxu0 0.0
        %451 = vmatprep.subr.mxu0 0.0
        %452 = vmatpush1.msra.mxu0 0.0
        %453 = vmatprep.subr.mxu0 0.0
        %454 = vmatpush1.msra.mxu0 0.0
        %455 = vmatprep.subr.mxu0 0.0
        %456 = vmatpush1.msra.mxu0 0.0
        %457 = vmatprep.subr.mxu0 0.0
        %458 = vmatpush1.msra.mxu0 0.0
        %459 = vmatprep.subr.mxu0 0.0
        %460 = vmatpush1.msra.mxu0 0.0
        %461 = vmatprep.subr.mxu0 0.0
        %462 = vmatpush1.msra.mxu0 0.0
        %463 = vmatprep.subr.mxu0 0.0
        %464 = vmatpush1.msra.mxu0 0.0
        %465 = vmatprep.subr.mxu0 0.0
        %466 = vmatpush1.msra.mxu0 0.0
        %467 = vmatprep.subr.mxu0 0.0
        %468 = vmatpush1.msra.mxu0 0.0
        %469 = vmatprep.subr.mxu0 0.0
        %470 = vmatpush1.msra.mxu0 0.0
        %471 = vmatprep.subr.mxu0 0.0
        %472 = vmatpush1.msra.mxu0 0.0
        %473 = vmatprep.subr.mxu0 0.0
        %474 = vmatpush1.msra.mxu0 0.0
        %475 = vmatprep.subr.mxu0 0.0
        %476 = vmatpush1.msra.mxu0 0.0
        %477 = vmatprep.subr.mxu0 0.0
        %478 = vmatpush1.msra.mxu0 0.0
        %479 = vmatprep.subr.mxu0 0.0
        %480 = vmatpush1.msra.mxu0 0.0
        %481 = vmatprep.subr.mxu0 0.0
        %482 = vmatpush1.msra.mxu0 0.0
        %483 = vmatprep.subr.mxu0 0.0
        %484 = vmatpush1.msra.mxu0 0.0
        %485 = vmatprep.subr.mxu0 0.0
        %486 = vmatpush1.msra.mxu0 0.0
        %487 = vmatprep.subr.mxu0 0.0
        %488 = vmatpush1.msra.mxu0 0.0
        %489 = vmatprep.subr.mxu0 0.0
        %490 = vmatpush1.msra.mxu0 0.0
        %491 = vmatprep.subr.mxu0 0.0
        %492 = vmatpush1.msra.mxu0 0.0
        %493 = vmatprep.subr.mxu0 0.0
        %494 = vmatpush1.msra.mxu0 0.0
        %495 = vmatprep.subr.mxu0 0.0
        %496 = vmatpush1.msra.mxu0 0.0
        %497 = vmatprep.subr.mxu0 0.0
        %498 = vmatpush1.msra.mxu0 0.0
        %499 = vmatprep.subr.mxu0 0.0
        %500 = vmatpush1.msra.mxu0 0.0
        %501 = vmatprep.subr.mxu0 0.0
        %502 = vmatpush1.msra.mxu0 0.0
        %503 = vmatprep.subr.mxu0 0.0
        %504 = vmatpush1.msra.mxu0 0.0
        %505 = vmatprep.subr.mxu0 0.0
        %506 = vmatpush1.msra.mxu0 0.0
        %507 = vmatprep.mubr.f32.mxu0 0.0
        %508 = vmatmul.mubr.f32.gmra.mrb[0].mxu0 %v441
        %v509 = vpop.f32.mrb[0].mxu0
        %v510 = vadd.f32 %v437, %v509
        %v511 = vpop.f32.mrb[0].mxu0
        %512 = vdwg.mxu0
        %vm513 = vcmp.gt.f32.partialorder %v510, 0.0
        %v514 = vmul.f32 %v510, 0.05
        %v515 = vsel %vm513, %v510, %v514
        %v516 = vld [vmem:[%s3] sm:$0xff]
        %v517 = vld [vmem:[%s3 + $0x8] sm:$0xff]
        %v518 = vld [vmem:[%s3 + $0x10] sm:$0xff]
        %v519 = vld [vmem:[%s3 + $0x18] sm:$0xff]
        %v520 = vld [vmem:[%s4] sm:$0x1]
        %v522 = vlaneseq
        %v523 = vshrl.u32 %v522, 7
        %v524 = vsub.s32 0, %v523
        %v525 = vrot.slane %v520, %v524
        %vm527 = vcmask 261120
        %v529 = vsel %vm527, %v515, 0
        %531 = vmatprep.subr.mxu0 0.0
        %532 = vmatpush1.msra.mxu0 %v516
        %533 = vmatprep.subr.mxu0 0.0
        %534 = vmatpush1.msra.mxu0 %v517
        %535 = vmatprep.subr.mxu0 0.0
        %536 = vmatpush1.msra.mxu0 %v518
        %537 = vmatprep.subr.mxu0 0.0
        %538 = vmatpush1.msra.mxu0 %v519
        %539 = vmatprep.subr.mxu0 0.0
        %540 = vmatpush1.msra.mxu0 0.0
        %541 = vmatprep.subr.mxu0 0.0
        %542 = vmatpush1.msra.mxu0 0.0
        %543 = vmatprep.subr.mxu0 0.0
        %544 = vmatpush1.msra.mxu0 0.0
        %545 = vmatprep.subr.mxu0 0.0
        %546 = vmatpush1.msra.mxu0 0.0
        %547 = vmatprep.subr.mxu0 0.0
        %548 = vmatpush1.msra.mxu0 0.0
        %549 = vmatprep.subr.mxu0 0.0
        %550 = vmatpush1.msra.mxu0 0.0
        %551 = vmatprep.subr.mxu0 0.0
        %552 = vmatpush1.msra.mxu0 0.0
        %553 = vmatprep.subr.mxu0 0.0
        %554 = vmatpush1.msra.mxu0 0.0
        %555 = vmatprep.subr.mxu0 0.0
        %556 = vmatpush1.msra.mxu0 0.0
        %557 = vmatprep.subr.mxu0 0.0
        %558 = vmatpush1.msra.mxu0 0.0
        %559 = vmatprep.subr.mxu0 0.0
        %560 = vmatpush1.msra.mxu0 0.0
        %561 = vmatprep.subr.mxu0 0.0
        %562 = vmatpush1.msra.mxu0 0.0
        %563 = vmatprep.subr.mxu0 0.0
        %564 = vmatpush1.msra.mxu0 0.0
        %565 = vmatprep.subr.mxu0 0.0
        %566 = vmatpush1.msra.mxu0 0.0
        %567 = vmatprep.subr.mxu0 0.0
        %568 = vmatpush1.msra.mxu0 0.0
        %569 = vmatprep.subr.mxu0 0.0
        %570 = vmatpush1.msra.mxu0 0.0
        %571 = vmatprep.subr.mxu0 0.0
        %572 = vmatpush1.msra.mxu0 0.0
        %573 = vmatprep.subr.mxu0 0.0
        %574 = vmatpush1.msra.mxu0 0.0
        %575 = vmatprep.subr.mxu0 0.0
        %576 = vmatpush1.msra.mxu0 0.0
        %577 = vmatprep.subr.mxu0 0.0
        %578 = vmatpush1.msra.mxu0 0.0
        %579 = vmatprep.subr.mxu0 0.0
        %580 = vmatpush1.msra.mxu0 0.0
        %581 = vmatprep.subr.mxu0 0.0
        %582 = vmatpush1.msra.mxu0 0.0
        %583 = vmatprep.subr.mxu0 0.0
        %584 = vmatpush1.msra.mxu0 0.0
        %585 = vmatprep.subr.mxu0 0.0
        %586 = vmatpush1.msra.mxu0 0.0
        %587 = vmatprep.subr.mxu0 0.0
        %588 = vmatpush1.msra.mxu0 0.0
        %589 = vmatprep.subr.mxu0 0.0
        %590 = vmatpush1.msra.mxu0 0.0
        %591 = vmatprep.subr.mxu0 0.0
        %592 = vmatpush1.msra.mxu0 0.0
        %593 = vmatprep.subr.mxu0 0.0
        %594 = vmatpush1.msra.mxu0 0.0
        %595 = vmatprep.mubr.f32.mxu0 0.0
        %596 = vmatmul.mubr.f32.gmra.mrb[0].mxu0 %v529
        %v597 = vpop.f32.mrb[0].mxu0
        %v598 = vadd.f32 %v525, %v597
        %v599 = vpop.f32.mrb[0].mxu0
        %600 = vdwg.mxu0
        %vm601 = vcmp.gt.f32.partialorder %v598, 0.0
        %v602 = vmul.f32 %v598, 0.05
        %v603 = vsel %vm601, %v598, %v602
        %v604 = vld [vmem:[%s5] sm:$0xff]
        %v605 = vld [vmem:[%s5 + $0x8] sm:$0xff]
        %v606 = vld [vmem:[%s5 + $0x10] sm:$0xff]
        %v607 = vld [vmem:[%s5 + $0x18] sm:$0xff]
        %v608 = vld [vmem:[#allocation7] sm:$0x1]
        %v610 = vlaneseq
        %v611 = vshrl.u32 %v610, 7
        %v612 = vsub.s32 0, %v611
        %v613 = vrot.slane %v608, %v612
        %v616 = vsel %vm527, %v603, 0
        %618 = vmatprep.subr.mxu0 0.0
        %619 = vmatpush1.msra.mxu0 %v604
        %620 = vmatprep.subr.mxu0 0.0
        %621 = vmatpush1.msra.mxu0 %v605
        %622 = vmatprep.subr.mxu0 0.0
        %623 = vmatpush1.msra.mxu0 %v606
        %624 = vmatprep.subr.mxu0 0.0
        %625 = vmatpush1.msra.mxu0 %v607
        %626 = vmatprep.subr.mxu0 0.0
        %627 = vmatpush1.msra.mxu0 0.0
        %628 = vmatprep.subr.mxu0 0.0
        %629 = vmatpush1.msra.mxu0 0.0
        %630 = vmatprep.subr.mxu0 0.0
        %631 = vmatpush1.msra.mxu0 0.0
        %632 = vmatprep.subr.mxu0 0.0
        %633 = vmatpush1.msra.mxu0 0.0
        %634 = vmatprep.subr.mxu0 0.0
        %635 = vmatpush1.msra.mxu0 0.0
        %636 = vmatprep.subr.mxu0 0.0
        %637 = vmatpush1.msra.mxu0 0.0
        %638 = vmatprep.subr.mxu0 0.0
        %639 = vmatpush1.msra.mxu0 0.0
        %640 = vmatprep.subr.mxu0 0.0
        %641 = vmatpush1.msra.mxu0 0.0
        %642 = vmatprep.subr.mxu0 0.0
        %643 = vmatpush1.msra.mxu0 0.0
        %644 = vmatprep.subr.mxu0 0.0
        %645 = vmatpush1.msra.mxu0 0.0
        %646 = vmatprep.subr.mxu0 0.0
        %647 = vmatpush1.msra.mxu0 0.0
        %648 = vmatprep.subr.mxu0 0.0
        %649 = vmatpush1.msra.mxu0 0.0
        %650 = vmatprep.subr.mxu0 0.0
        %651 = vmatpush1.msra.mxu0 0.0
        %652 = vmatprep.subr.mxu0 0.0
        %653 = vmatpush1.msra.mxu0 0.0
        %654 = vmatprep.subr.mxu0 0.0
        %655 = vmatpush1.msra.mxu0 0.0
        %656 = vmatprep.subr.mxu0 0.0
        %657 = vmatpush1.msra.mxu0 0.0
        %658 = vmatprep.subr.mxu0 0.0
        %659 = vmatpush1.msra.mxu0 0.0
        %660 = vmatprep.subr.mxu0 0.0
        %661 = vmatpush1.msra.mxu0 0.0
        %662 = vmatprep.subr.mxu0 0.0
        %663 = vmatpush1.msra.mxu0 0.0
        %664 = vmatprep.subr.mxu0 0.0
        %665 = vmatpush1.msra.mxu0 0.0
        %666 = vmatprep.subr.mxu0 0.0
        %667 = vmatpush1.msra.mxu0 0.0
        %668 = vmatprep.subr.mxu0 0.0
        %669 = vmatpush1.msra.mxu0 0.0
        %670 = vmatprep.subr.mxu0 0.0
        %671 = vmatpush1.msra.mxu0 0.0
        %672 = vmatprep.subr.mxu0 0.0
        %673 = vmatpush1.msra.mxu0 0.0
        %674 = vmatprep.subr.mxu0 0.0
        %675 = vmatpush1.msra.mxu0 0.0
        %676 = vmatprep.subr.mxu0 0.0
        %677 = vmatpush1.msra.mxu0 0.0
        %678 = vmatprep.subr.mxu0 0.0
        %679 = vmatpush1.msra.mxu0 0.0
        %680 = vmatprep.subr.mxu0 0.0
        %681 = vmatpush1.msra.mxu0 0.0
        %682 = vmatprep.mubr.f32.mxu0 0.0
        %683 = vmatmul.mubr.f32.gmra.mrb[0].mxu0 %v616
        %v684 = vpop.f32.mrb[0].mxu0
        %v685 = vadd.f32 %v613, %v684
        %v686 = vpop.f32.mrb[0].mxu0
        %687 = vdwg.mxu0
        %vm688 = vcmp.gt.f32.partialorder %v685, 0.0
        %v689 = vmul.f32 %v685, 0.05
        %v690 = vsel %vm688, %v685, %v689
        %v691 = vld [vmem:[#allocation8] sm:$0xff]
        %v692 = vld [vmem:[#allocation8 + $0x8] sm:$0xff]
        %v693 = vld [vmem:[#allocation8 + $0x10] sm:$0xff]
        %v694 = vld [vmem:[#allocation8 + $0x18] sm:$0xff]
        %v695 = vld [vmem:[#allocation10] sm:$0x1]
        %v697 = vlaneseq
        %v698 = vshrl.u32 %v697, 7
        %v699 = vsub.s32 0, %v698
        %v700 = vrot.slane %v695, %v699
        %v703 = vsel %vm527, %v690, 0
        %705 = vmatprep.subr.mxu0 0.0
        %706 = vmatpush1.msra.mxu0 %v691
        %707 = vmatprep.subr.mxu0 0.0
        %708 = vmatpush1.msra.mxu0 %v692
        %709 = vmatprep.subr.mxu0 0.0
        %710 = vmatpush1.msra.mxu0 %v693
        %711 = vmatprep.subr.mxu0 0.0
        %712 = vmatpush1.msra.mxu0 %v694
        %713 = vmatprep.subr.mxu0 0.0
        %714 = vmatpush1.msra.mxu0 0.0
        %715 = vmatprep.subr.mxu0 0.0
        %716 = vmatpush1.msra.mxu0 0.0
        %717 = vmatprep.subr.mxu0 0.0
        %718 = vmatpush1.msra.mxu0 0.0
        %719 = vmatprep.subr.mxu0 0.0
        %720 = vmatpush1.msra.mxu0 0.0
        %721 = vmatprep.subr.mxu0 0.0
        %722 = vmatpush1.msra.mxu0 0.0
        %723 = vmatprep.subr.mxu0 0.0
        %724 = vmatpush1.msra.mxu0 0.0
        %725 = vmatprep.subr.mxu0 0.0
        %726 = vmatpush1.msra.mxu0 0.0
        %727 = vmatprep.subr.mxu0 0.0
        %728 = vmatpush1.msra.mxu0 0.0
        %729 = vmatprep.subr.mxu0 0.0
        %730 = vmatpush1.msra.mxu0 0.0
        %731 = vmatprep.subr.mxu0 0.0
        %732 = vmatpush1.msra.mxu0 0.0
        %733 = vmatprep.subr.mxu0 0.0
        %734 = vmatpush1.msra.mxu0 0.0
        %735 = vmatprep.subr.mxu0 0.0
        %736 = vmatpush1.msra.mxu0 0.0
        %737 = vmatprep.subr.mxu0 0.0
        %738 = vmatpush1.msra.mxu0 0.0
        %739 = vmatprep.subr.mxu0 0.0
        %740 = vmatpush1.msra.mxu0 0.0
        %741 = vmatprep.subr.mxu0 0.0
        %742 = vmatpush1.msra.mxu0 0.0
        %743 = vmatprep.subr.mxu0 0.0
        %744 = vmatpush1.msra.mxu0 0.0
        %745 = vmatprep.subr.mxu0 0.0
        %746 = vmatpush1.msra.mxu0 0.0
        %747 = vmatprep.subr.mxu0 0.0
        %748 = vmatpush1.msra.mxu0 0.0
        %749 = vmatprep.subr.mxu0 0.0
        %750 = vmatpush1.msra.mxu0 0.0
        %751 = vmatprep.subr.mxu0 0.0
        %752 = vmatpush1.msra.mxu0 0.0
        %753 = vmatprep.subr.mxu0 0.0
        %754 = vmatpush1.msra.mxu0 0.0
        %755 = vmatprep.subr.mxu0 0.0
        %756 = vmatpush1.msra.mxu0 0.0
        %757 = vmatprep.subr.mxu0 0.0
        %758 = vmatpush1.msra.mxu0 0.0
        %759 = vmatprep.subr.mxu0 0.0
        %760 = vmatpush1.msra.mxu0 0.0
        %761 = vmatprep.subr.mxu0 0.0
        %762 = vmatpush1.msra.mxu0 0.0
        %763 = vmatprep.subr.mxu0 0.0
        %764 = vmatpush1.msra.mxu0 0.0
        %765 = vmatprep.subr.mxu0 0.0
        %766 = vmatpush1.msra.mxu0 0.0
        %767 = vmatprep.subr.mxu0 0.0
        %768 = vmatpush1.msra.mxu0 0.0
        %769 = vmatprep.mubr.f32.mxu0 0.0
        %770 = vmatmul.mubr.f32.gmra.mrb[0].mxu0 %v703
        %v771 = vpop.f32.mrb[0].mxu0
        %v772 = vadd.f32 %v700, %v771
        %v773 = vpop.f32.mrb[0].mxu0
        %774 = vdwg.mxu0
        %vm775 = vcmp.gt.f32.partialorder %v772, 0.0
        %v776 = vmul.f32 %v772, 0.05
        %v777 = vsel %vm775, %v772, %v776
        %v778 = vld [vmem:[%s9] sm:$0xff]
        %v779 = vld [vmem:[%s9 + $0x8] sm:$0xff]
        %v780 = vld [vmem:[%s9 + $0x10] sm:$0xff]
        %v781 = vld [vmem:[%s9 + $0x18] sm:$0xff]
        %v783 = vsel %vm527, %v777, 0
        %785 = vmatprep.subr.mxu0 0.0
        %786 = vmatpush1.msra.mxu0 %v778
        %787 = vmatprep.subr.mxu0 0.0
        %788 = vmatpush1.msra.mxu0 %v779
        %789 = vmatprep.subr.mxu0 0.0
        %790 = vmatpush1.msra.mxu0 %v780
        %791 = vmatprep.subr.mxu0 0.0
        %792 = vmatpush1.msra.mxu0 %v781
        %793 = vmatprep.subr.mxu0 0.0
        %794 = vmatpush1.msra.mxu0 0.0
        %795 = vmatprep.subr.mxu0 0.0
        %796 = vmatpush1.msra.mxu0 0.0
        %797 = vmatprep.subr.mxu0 0.0
        %798 = vmatpush1.msra.mxu0 0.0
        %799 = vmatprep.subr.mxu0 0.0
        %800 = vmatpush1.msra.mxu0 0.0
        %801 = vmatprep.subr.mxu0 0.0
        %802 = vmatpush1.msra.mxu0 0.0
        %803 = vmatprep.subr.mxu0 0.0
        %804 = vmatpush1.msra.mxu0 0.0
        %805 = vmatprep.subr.mxu0 0.0
        %806 = vmatpush1.msra.mxu0 0.0
        %807 = vmatprep.subr.mxu0 0.0
        %808 = vmatpush1.msra.mxu0 0.0
        %809 = vmatprep.subr.mxu0 0.0
        %810 = vmatpush1.msra.mxu0 0.0
        %811 = vmatprep.subr.mxu0 0.0
        %812 = vmatpush1.msra.mxu0 0.0
        %813 = vmatprep.subr.mxu0 0.0
        %814 = vmatpush1.msra.mxu0 0.0
        %815 = vmatprep.subr.mxu0 0.0
        %816 = vmatpush1.msra.mxu0 0.0
        %817 = vmatprep.subr.mxu0 0.0
        %818 = vmatpush1.msra.mxu0 0.0
        %819 = vmatprep.subr.mxu0 0.0
        %820 = vmatpush1.msra.mxu0 0.0
        %821 = vmatprep.subr.mxu0 0.0
        %822 = vmatpush1.msra.mxu0 0.0
        %823 = vmatprep.subr.mxu0 0.0
        %824 = vmatpush1.msra.mxu0 0.0
        %825 = vmatprep.subr.mxu0 0.0
        %826 = vmatpush1.msra.mxu0 0.0
        %827 = vmatprep.subr.mxu0 0.0
        %828 = vmatpush1.msra.mxu0 0.0
        %829 = vmatprep.subr.mxu0 0.0
        %830 = vmatpush1.msra.mxu0 0.0
        %831 = vmatprep.subr.mxu0 0.0
        %832 = vmatpush1.msra.mxu0 0.0
        %833 = vmatprep.subr.mxu0 0.0
        %834 = vmatpush1.msra.mxu0 0.0
        %835 = vmatprep.subr.mxu0 0.0
        %836 = vmatpush1.msra.mxu0 0.0
        %837 = vmatprep.subr.mxu0 0.0
        %838 = vmatpush1.msra.mxu0 0.0
        %839 = vmatprep.subr.mxu0 0.0
        %840 = vmatpush1.msra.mxu0 0.0
        %841 = vmatprep.subr.mxu0 0.0
        %842 = vmatpush1.msra.mxu0 0.0
        %843 = vmatprep.subr.mxu0 0.0
        %844 = vmatpush1.msra.mxu0 0.0
        %845 = vmatprep.subr.mxu0 0.0
        %846 = vmatpush1.msra.mxu0 0.0
        %847 = vmatprep.subr.mxu0 0.0
        %848 = vmatpush1.msra.mxu0 0.0
        %849 = vmatprep.mubr.f32.mxu0 0.0
        %850 = vmatmul.mubr.f32.gmra.mrb[0].mxu0 %v783
        %v851 = vpop.f32.mrb[0].mxu0
        %v852 = vadd.f32 0.0, %v851
        %v853 = vpop.f32.mrb[0].mxu0
        %854 = vdwg.mxu0
        %vm855 = vcmask 195584
        %856 = vst.msk [vmem:[%s428] sm:$0xff] %vm855, %v852
        %s857 = sand.u32 %s252, 1
        %s858 = scalar_lea.sflag [#allocation4], %s857
        %s859 = sand.u32 %s252, 1
        %s860 = smul.addr %s859, 8
        %s861 = scalar_lea.vmem [#allocation11], %s860
        // Predicated region
        $region81: #{tpu_custom_call.1} parent=59 // pred_check
          %p862 = pneg %p262
        $region82: #{tpu_custom_call.1} parent=59 // pred_check_branch
          %864 = sbr.rel (%p862) target = $region84
        $region83: #{tpu_custom_call.1} parent=59 // pred_region
          %s866 = ssub.s32 128, 128
          %867 = vsyncadd %s858, %s866
          %s868 = smul.addr %s29, 128
          %s869 = scalar_lea.hbm %s10, %s868
          %s871 = sshll.u32 %s861, 4
          %s872 = int_to_ptr.vmem [resolvable:$true] %s871
          %874 = dma.vmem_to_hbm [thread:$0]  %s872, 128, %s869, %s858
        $region84: #{tpu_custom_call.1} parent=59 // pred_fallthru
          _
      $region60: #{tpu_custom_call.1} parent=5 // pred_fallthru
        _
      %p875 = scmp.le.s32.totalorder 2, %s24
      // Predicated region
      $region85: #{tpu_custom_call.1} parent=5 // pred_check
        %p876 = pneg %p875
      $region86: #{tpu_custom_call.1} parent=5 // pred_check_branch
        %878 = sbr.rel (%p876) target = $region88
      $region87: #{tpu_custom_call.1} parent=5 // pred_region
        %s879 = ssub.s32 %s24, 2
        // Predicated region
        $region89: #{tpu_custom_call.1} parent=87 // pred_check
          %p880 = pneg %p268
        $region90: #{tpu_custom_call.1} parent=87 // pred_check_branch
          %882 = sbr.rel (%p880) target = $region92
        $region91: #{tpu_custom_call.1} parent=87 // pred_region
          %s883 = sand.u32 %s253, 1
          %s884 = scalar_lea.sflag [#allocation4], %s883
          %s885 = sand.u32 %s253, 1
          %s886 = smul.addr %s885, 8
          %s887 = scalar_lea.vmem [#allocation11], %s886
          %888 = dma.done %s884, 128
        $region92: #{tpu_custom_call.1} parent=87 // pred_fallthru
          _
      $region88: #{tpu_custom_call.1} parent=5 // pred_fallthru
        _
    $region6: #{tpu_custom_call.1} parent=1 // loop_footer
      %s28 = sadd.s32 1, %s24
    $region7: #{tpu_custom_call.1} parent=1 // loop_footer_branch
      %23 = sbr.rel target = $region3
    $region8: #{tpu_custom_call.1} parent=1 // loop_exit
      _
    %889 = vsyncpa [#allocation3], 1
    %s890 = scalar_lea.sflag [#allocation3], 1
    %891 = vsyncpa %s890, 1
    %892 = vsyncpa [#allocation6], 1
    %893 = vsyncpa [#allocation9], 1
    %894 = vsyncpa [#allocation4], 1
    %s895 = scalar_lea.sflag [#allocation4], 1
    %896 = vsyncpa %s895, 1

</llo_original>
